<compile_context>
chip_gen: v5e
topology: v5e:2x2
jax: 0.10.0
libtpu: 0.0.40
codegen_flags: <defaults>
</compile_context>

<pallas_src>
import functools
import math

import numpy as np
import jax
import jax.numpy as jnp
from jax.experimental import pallas as pl
from jax.experimental.pallas import tpu as pltpu


LANE = 128


def _round_up(x, m):
    return ((x + m - 1) // m) * m


def _cdiv(a, b):
    return (a + b - 1) // b


# ----------------------------------------------------------------------------
# Parameter / filter setup (mirrors GeneralizedGaussianFilter.construct_filters)
# ----------------------------------------------------------------------------
def make_filters(in_channels, out_channels, T, sample_rate,
                 f_mean=(23.0,), bandwidth=(44.0,), shape=(2.0,),
                 group_delay=(20.0,), clamp_f_mean=(1.0, 45.0)):
    nyq = sample_rate / 2.0
    F = T // 2 + 1

    # n_range = fftfreq(T, 1/sr)[:T//2] ++ [nyquist], normalized by nyquist
    n_range = np.concatenate(
        [np.fft.fftfreq(T, d=1.0 / sample_rate)[: T // 2], [nyq]]) / nyq   # (F,)

    f_mean_v = np.array(f_mean * in_channels, np.float64) / nyq            # (OC,)
    bw_v = np.array(bandwidth * in_channels, np.float64) / nyq
    shp_v = np.array(shape * in_channels, np.float64)
    gd_v = np.array(group_delay * in_channels, np.float64) / 1000.0

    # clamps (as done in construct_filters)
    f_mean_v = np.clip(f_mean_v, clamp_f_mean[0] / nyq, clamp_f_mean[1] / nyq)
    bw_v = np.clip(bw_v, 1.0 / nyq, 1.0)
    shp_v = np.clip(shp_v, 2.0, 3.0)

    # exponential power magnitude response
    se = (shp_v * 8.0 - 14.0)[:, None]                                     # (OC,1)
    mean = f_mean_v[:, None]
    fwhm = bw_v[:, None]
    scale = fwhm / (2.0 * np.log(2.0) ** (1.0 / se))
    mag = np.exp(-((np.abs(n_range[None, :] - mean) + 1e-8) / scale) ** se)
    mag = mag / mag.max(axis=-1, keepdims=True)                            # (OC,F)

    # linear phase from group delay
    f = np.linspace(0.0, sample_rate, F)[None, :]
    pha = -gd_v[:, None] * f * np.pi
    filt_real = (mag * np.cos(pha)).astype(np.float32)                     # (OC,F)
    filt_imag = (mag * np.sin(pha)).astype(np.float32)                     # (OC,F)
    return filt_real, filt_imag


def make_fused_dft(T):
    """Fused, tightly packed rfft / irfft matrices (real matmuls).

    dft_fused : (T, P2F)  with [:, :F] = cos, [:, F:2F] = -sin
                (spec = x @ dft_fused -> [Re | Im | 0pad], pad lanes exactly 0)
    idft_fused: (P2F, Tp) with rows [:F] = w*cos/T, rows [F:2F] = -w*sin/T
                (out = [y_r | y_i | 0] @ idft_fused, padded rows/cols exactly 0)
    where F = T//2 + 1, P2F = round_up(2F, 128), Tp = round_up(T, 128).
    """
    F = T // 2 + 1
    P2F = _round_up(2 * F, LANE)
    Tp = _round_up(T, LANE)

    t = np.arange(T)[:, None]
    k = np.arange(F)[None, :]
    ang = 2.0 * np.pi * t * k / T                                          # (T,F)

    dft_fused = np.zeros((T, P2F), np.float32)
    dft_fused[:, :F] = np.cos(ang)
    dft_fused[:, F:2 * F] = -np.sin(ang)

    w = np.full((F,), 2.0)
    w[0] = 1.0
    if T % 2 == 0:
        w[-1] = 1.0
    ang2 = 2.0 * np.pi * np.arange(F)[:, None] * np.arange(T)[None, :] / T  # (F,T)
    idft_fused = np.zeros((P2F, Tp), np.float32)
    idft_fused[:F, :T] = w[:, None] * np.cos(ang2) / T
    idft_fused[F:2 * F, :T] = -w[:, None] * np.sin(ang2) / T
    return dft_fused, idft_fused


def build_constants(in_channels, out_channels, T, sample_rate,
                    f_mean, bandwidth, shape, group_delay,
                    clamp_f_mean=(1.0, 45.0),
                    matmul_dtype=jnp.bfloat16,      # MXU constants (bf16 on all chips)
                    filter_dtype=jnp.bfloat16):     # use jnp.float32 on v5e (no bf16 VPU)
    """Host-side (numpy) setup of filters + fused DFT matrices.

    Returns filters shaped (r, IC, P2F) -- NOT batch-replicated -- plus the
    fused DFT / iDFT matrices and r = out_channels // in_channels.
    """
    F = T // 2 + 1
    P2F = _round_up(2 * F, LANE)
    r = out_channels // in_channels

    filt_real, filt_imag = make_filters(
        in_channels, out_channels, T, sample_rate,
        f_mean, bandwidth, shape, group_delay, clamp_f_mean)

    fused = np.zeros((out_channels, P2F), np.float32)
    fused[:, :F] = filt_real
    fused[:, F:2 * F] = filt_imag                                 # (OC, P2F)

    # Rearranged per filter-index j (output channel i = c*r + j): (r, IC, P2F)
    by_j = fused.reshape(in_channels, r, P2F).transpose(1, 0, 2)

    dft_fused, idft_fused = make_fused_dft(T)

    return (jnp.asarray(by_j, dtype=filter_dtype),
            jnp.asarray(dft_fused, dtype=matmul_dtype),
            jnp.asarray(idft_fused, dtype=matmul_dtype),
            r)


# ----------------------------------------------------------------------------
# Pallas kernel
# ----------------------------------------------------------------------------
def ggf_kernel(x_ref, dft_ref, filt_ref, idft_ref, o_ref, *,
               num_filt, t_pad, accumulate):
    if accumulate:
        @pl.when(pl.program_id(1) == 0)
        def _():
            o_ref[...] = jnp.zeros_like(o_ref)

    # rfft chunk as one fused MXU matmul: spec = [Re | Im] (K chunk), f32 acc.
    spec = jnp.dot(x_ref[...], dft_ref[...],
                   preferred_element_type=jnp.float32)          # (Mt, Kt) f32
    mt = spec.shape[0]

    # All r filters applied at once on the VPU (bf16 on v6e/v7x, f32 on v5e).
    y = spec.astype(filt_ref.dtype)[None, :, :] * filt_ref[...]  # (r, Mt, Kt)

    # Single fused irfft matmul for all r filters.
    y2 = y.reshape(num_filt * mt, -1).astype(idft_ref.dtype)     # (r*Mt, Kt)
    out = jnp.dot(y2, idft_ref[...],
                  preferred_element_type=jnp.float32)            # (r*Mt, Tp) f32

    for j in range(num_filt):
        sl = slice(j * t_pad, (j + 1) * t_pad)                   # 128-aligned lanes
        blk = out[j * mt:(j + 1) * mt, :]
        if accumulate:
            o_ref[:, sl] += blk
        else:
            o_ref[:, sl] = blk


def _pick_row_tile(rows, in_channels, target=256):
    """Row-tile: multiple of lcm(8, IC) (sublane + filter alignment); prefers
    >= 2 grid steps so megacore (v7x) has work on both TensorCores."""
    base = (8 * in_channels) // math.gcd(8, in_channels)
    if rows <= base:
        return rows                       # full-extent tile (always legal)
    m = max(base, (min(target, rows) // base) * base)
    if _cdiv(rows, m) < 2:                # guarantee >=2 parallel steps
        m = max(base, ((rows // 2) // base) * base)
    return m


def _vmem_footprint(m_tile, T, t_pad, k_tile, r, n_k,
                    x_bytes, filt_bytes, mm_bytes, out_bytes):
    nbuf_const = 1 if n_k == 1 else 2
    fp = 0
    fp += 2 * m_tile * T * x_bytes                       # x rows (double buffered)
    fp += nbuf_const * T * k_tile * mm_bytes             # fused DFT chunk
    fp += nbuf_const * k_tile * t_pad * mm_bytes         # fused iDFT chunk
    fp += nbuf_const * r * m_tile * k_tile * filt_bytes  # filter chunk
    fp += 2 * m_tile * r * t_pad * out_bytes             # output block
    # in-kernel temporaries: spec (f32), y, y2, irfft result (f32)
    fp += m_tile * k_tile * 4
    fp += r * m_tile * k_tile * (filt_bytes + mm_bytes)
    fp += r * m_tile * t_pad * 4
    return fp


def generalized_gaussian_filter(x, filt, dft_fused, idft_fused, num_filt, *,
                                target_row_tile=256,
                                vmem_budget_bytes=40 * 2**20):
    """x: (B, IC, T) float32 -> (B, OC, T) float32 (inverse_fourier=True path)."""
    B, IC, T = x.shape
    rows = B * IC
    r = num_filt
    P2F = dft_fused.shape[1]
    Tp = idft_fused.shape[1]
    assert dft_fused.shape == (T, P2F)
    assert idft_fused.shape == (P2F, Tp)
    assert filt.shape == (r, IC, P2F)

    # Flatten rows (free) and cast to the MXU dtype; no repeat_interleave.
    x_flat = x.reshape(rows, T).astype(dft_fused.dtype)

    m_tile = _pick_row_tile(rows, IC, target_row_tile)
    grid_m = _cdiv(rows, m_tile)

    # Filters tiled across one row-tile only (IC-periodic); grid-invariant.
    filt_tiled = jnp.tile(filt, (1, m_tile // IC, 1))            # (r, m_tile, P2F)

    x_bytes = x_flat.dtype.itemsize
    mm_bytes = dft_fused.dtype.itemsize
    filt_bytes = filt.dtype.itemsize
    out_bytes = 4

    # Frequency (K) chunking so all blocks fit the VMEM budget (v7x: 64 MiB).
    units = P2F // LANE
    k_tile, n_k = LANE, units
    for cand in range(1, units + 1):
        if units % cand:
            continue
        kt = (units // cand) * LANE
        if _vmem_footprint(m_tile, T, Tp, kt, r, cand,
                           x_bytes, filt_bytes, mm_bytes, out_bytes) \
                <= vmem_budget_bytes:
            k_tile, n_k = kt, cand
            break
    footprint = _vmem_footprint(m_tile, T, Tp, k_tile, r, n_k,
                                x_bytes, filt_bytes, mm_bytes, out_bytes)
    vmem_limit = int(min(max(int(footprint * 1.5), 8 * 2**20), 64 * 2**20))

    # Grid-invariant constants get a single buffer; streamed chunks keep 2.
    const_mode = pl.Buffered(1) if n_k == 1 else None
    accumulate = n_k > 1
    grid = (grid_m, n_k)

    flops = int(2 * rows * T * P2F + 2 * rows * r * P2F * Tp)
    bytes_accessed = int(
        x_flat.size * x_bytes
        + dft_fused.size * mm_bytes
        + idft_fused.size * mm_bytes
        + filt_tiled.size * filt_bytes
        + rows * r * Tp * out_bytes)

    out_flat = pl.pallas_call(
        functools.partial(ggf_kernel, num_filt=r, t_pad=Tp, accumulate=accumulate),
        out_shape=jax.ShapeDtypeStruct((rows, r * Tp), jnp.float32),
        grid_spec=pltpu.PrefetchScalarGridSpec(
            num_scalar_prefetch=0,
            grid=grid,
            in_specs=[
                pl.BlockSpec((m_tile, T), lambda m, k: (m, 0)),          # x rows
                pl.BlockSpec((T, k_tile), lambda m, k: (0, k),
                             pipeline_mode=const_mode),                  # fused DFT
                pl.BlockSpec((r, m_tile, k_tile), lambda m, k: (0, 0, k),
                             pipeline_mode=const_mode),                  # filters
                pl.BlockSpec((k_tile, Tp), lambda m, k: (k, 0),
                             pipeline_mode=const_mode),                  # fused iDFT
            ],
            out_specs=pl.BlockSpec((m_tile, r * Tp), lambda m, k: (m, 0)),
        ),
        compiler_params=pltpu.CompilerParams(
            dimension_semantics=("parallel", "arbitrary"),
            vmem_limit_bytes=vmem_limit),
        cost_estimate=pl.CostEstimate(
            flops=flops, transcendentals=0, bytes_accessed=bytes_accessed),
    )(x_flat, dft_fused, filt_tiled, idft_fused)

    # (B*IC, r*Tp) is contiguous in (b, c, j, t) order -> free reshape to
    # (B, IC*r, Tp); channel index c*r + j matches torch.repeat_interleave.
    out = out_flat.reshape(B, IC * r, Tp)
    if Tp != T:
        out = out[..., :T]
    return out


# ----------------------------------------------------------------------------
# Pure-JAX reference (mirrors the PyTorch forward exactly)
# ----------------------------------------------------------------------------
def reference(x, filt_real, filt_imag, T):
    IC = x.shape[1]
    OC = filt_real.shape[0]
    r = OC // IC
    X = jnp.fft.rfft(x, axis=-1)
    Xr = jnp.repeat(jnp.real(X), r, axis=1) * filt_real
    Xi = jnp.repeat(jnp.imag(X), r, axis=1) * filt_imag
    return jnp.fft.irfft(Xr + 1j * Xi, n=T, axis=-1)


if __name__ == "__main__":
    B, IC, T = 2, 4, 128
    sample_rate = 250.0
    # two filters per input channel -> out_channels = 2 * in_channels
    f_mean = (23.0, 10.0)
    bandwidth = (44.0, 20.0)
    shape = (2.0, 2.5)
    group_delay = (20.0, 20.0)
    OC = len(f_mean) * IC

    filt, dft_fused, idft_fused, r = build_constants(
        IC, OC, T, sample_rate, f_mean, bandwidth, shape, group_delay,
        matmul_dtype=jnp.bfloat16,
        filter_dtype=jnp.bfloat16)   # set filter_dtype=jnp.float32 on v5e

    key = jax.random.PRNGKey(0)
    x = jax.random.normal(key, (B, IC, T), dtype=jnp.float32)

    out = generalized_gaussian_filter(x, filt, dft_fused, idft_fused, r)
    out = jax.block_until_ready(out)

    filt_real, filt_imag = make_filters(IC, OC, T, sample_rate,
                                        f_mean, bandwidth, shape, group_delay)
    ref = reference(x, jnp.asarray(filt_real), jnp.asarray(filt_imag), T)
    np.testing.assert_allclose(np.asarray(out), np.asarray(ref),
                               atol=5e-2, rtol=5e-2)
    print("KERNEL_OK")
</pallas_src>

<mosaic_0001>
module attributes {stable_mosaic.version = 11 : i64} {
  func.func @ggf_kernel(%arg0: i32, %arg1: i32, %arg2: memref<8x128xbf16, #tpu.memory_space<vmem>>, %arg3: memref<128x256xbf16, #tpu.memory_space<vmem>>, %arg4: memref<2x8x256xbf16, #tpu.memory_space<vmem>>, %arg5: memref<256x128xbf16, #tpu.memory_space<vmem>>, %arg6: memref<8x256xf32, #tpu.memory_space<vmem>>) attributes {dimension_semantics = [#tpu.dimension_semantics<parallel>, #tpu.dimension_semantics<arbitrary>], iteration_bounds = array<i64: 1, 1>, scalar_prefetch = 0 : i64, scratch_operands = 0 : i64, tpu.core_type = #tpu.core_type<tc>, window_params = [{transform_indices = @transform_0, window_bounds = array<i64: 8, 128>}, {pipeline_mode = #tpu.pipeline_mode<synchronous>, transform_indices = @transform_1, window_bounds = array<i64: 128, 256>}, {pipeline_mode = #tpu.pipeline_mode<synchronous>, transform_indices = @transform_2, window_bounds = array<i64: 2, 8, 256>}, {pipeline_mode = #tpu.pipeline_mode<synchronous>, transform_indices = @transform_3, window_bounds = array<i64: 256, 128>}, {transform_indices = @transform_4, window_bounds = array<i64: 8, 256>}]} {
    %c0 = arith.constant 0 : index
    %c0_0 = arith.constant 0 : index
    %0 = vector.load %arg2[%c0, %c0_0] : memref<8x128xbf16, #tpu.memory_space<vmem>>, vector<8x128xbf16>
    %c0_1 = arith.constant 0 : index
    %c0_2 = arith.constant 0 : index
    %1 = vector.load %arg3[%c0_1, %c0_2] : memref<128x256xbf16, #tpu.memory_space<vmem>>, vector<128x256xbf16>
    %cst = arith.constant dense<0.000000e+00> : vector<8x256xf32>
    %2 = tpu.matmul %0, %1, %cst {dimension_numbers = #tpu.dot_dimension_numbers<[1], [0], [0], [1], [0, 0, 1, 1], [], []>} : vector<8x128xbf16>, vector<128x256xbf16>, vector<8x256xf32> -> vector<8x256xf32>
    %3 = arith.truncf %2 : vector<8x256xf32> to vector<8x256xbf16>
    %4 = vector.shape_cast %3 : vector<8x256xbf16> to vector<1x8x256xbf16>
    %c0_3 = arith.constant 0 : index
    %c0_4 = arith.constant 0 : index
    %c0_5 = arith.constant 0 : index
    %5 = vector.load %arg4[%c0_3, %c0_4, %c0_5] : memref<2x8x256xbf16, #tpu.memory_space<vmem>>, vector<2x8x256xbf16>
    %6 = vector.broadcast %4 : vector<1x8x256xbf16> to vector<2x8x256xbf16>
    %7 = arith.mulf %6, %5 : vector<2x8x256xbf16>
    %8 = vector.shape_cast %7 : vector<2x8x256xbf16> to vector<16x256xbf16>
    %c0_6 = arith.constant 0 : index
    %c0_7 = arith.constant 0 : index
    %9 = vector.load %arg5[%c0_6, %c0_7] : memref<256x128xbf16, #tpu.memory_space<vmem>>, vector<256x128xbf16>
    %cst_8 = arith.constant dense<0.000000e+00> : vector<16x128xf32>
    %10 = tpu.matmul %8, %9, %cst_8 {dimension_numbers = #tpu.dot_dimension_numbers<[1], [0], [0], [1], [0, 0, 1, 1], [], []>} : vector<16x256xbf16>, vector<256x128xbf16>, vector<16x128xf32> -> vector<16x128xf32>
    %11 = vector.extract_strided_slice %10 {offsets = [0, 0], sizes = [8, 128], strides = [1, 1]} : vector<16x128xf32> to vector<8x128xf32>
    %c0_9 = arith.constant 0 : index
    %c0_10 = arith.constant 0 : index
    %12 = vector.load %arg6[%c0_9, %c0_10] : memref<8x256xf32, #tpu.memory_space<vmem>>, vector<8x128xf32>
    tpu.vector_store %arg6[%c0_9, %c0_10], %11 {strides = array<i32>} : memref<8x256xf32, #tpu.memory_space<vmem>>, vector<8x128xf32>,
    %13 = vector.extract_strided_slice %10 {offsets = [8, 0], sizes = [8, 128], strides = [1, 1]} : vector<16x128xf32> to vector<8x128xf32>
    %c0_11 = arith.constant 0 : index
    %c128 = arith.constant 128 : index
    %14 = vector.load %arg6[%c0_11, %c128] : memref<8x256xf32, #tpu.memory_space<vmem>>, vector<8x128xf32>
    tpu.vector_store %arg6[%c0_11, %c128], %13 {strides = array<i32>} : memref<8x256xf32, #tpu.memory_space<vmem>>, vector<8x128xf32>,
    return
  }
  func.func @transform_0(%arg0: i32, %arg1: i32) -> (i32, i32) {
    %c0_i32 = arith.constant 0 : i32
    %c0_i32_0 = arith.constant 0 : i32
    return %arg0, %c0_i32 : i32, i32
  }
  func.func @transform_1(%arg0: i32, %arg1: i32) -> (i32, i32) {
    %c0_i32 = arith.constant 0 : i32
    %c0_i32_0 = arith.constant 0 : i32
    return %c0_i32, %arg1 : i32, i32
  }
  func.func @transform_2(%arg0: i32, %arg1: i32) -> (i32, i32, i32) {
    %c0_i32 = arith.constant 0 : i32
    %c0_i32_0 = arith.constant 0 : i32
    %c0_i32_1 = arith.constant 0 : i32
    return %c0_i32, %c0_i32_0, %arg1 : i32, i32, i32
  }
  func.func @transform_3(%arg0: i32, %arg1: i32) -> (i32, i32) {
    %c0_i32 = arith.constant 0 : i32
    %c0_i32_0 = arith.constant 0 : i32
    return %arg1, %c0_i32 : i32, i32
  }
  func.func @transform_4(%arg0: i32, %arg1: i32) -> (i32, i32) {
    %c0_i32 = arith.constant 0 : i32
    %c0_i32_0 = arith.constant 0 : i32
    return %arg0, %c0_i32 : i32, i32
  }
}

</mosaic_0001>

<llo_original>
// kernel: tpu_custom_call.1
$region0: #{tpu_custom_call.1}
  #allocation0 [shape = 'u32[]', space=smem, size = 0x4, offset = 0x4, fixed_abs, tag = 'smem constant byte address 0x4 - core index']
  #allocation1 [shape = 'u32[72,128]{1,0:T(1,128)}', space=vmem, size = 0x9000, scoped, tag = 'internal scratch']
  %s0 = inlined_call_operand.hbm [shape: bf16[8,128], index: 0, kind: input, shape index: {}]
  %s1 = inlined_call_operand.hbm [shape: bf16[128,256], index: 1, kind: input, shape index: {}]
  %s2 = inlined_call_operand.hbm [shape: bf16[2,8,256], index: 2, kind: input, shape index: {}]
  %s3 = inlined_call_operand.hbm [shape: bf16[256,128], index: 3, kind: input, shape index: {}]
  %s4 = inlined_call_operand.hbm [shape: f32[8,256], index: 4, kind: output, shape index: {}]
  %s5 = sld [smem:[#allocation0]]
  $region42: #{tpu_custom_call.1} parent=0
    _
  %s7 = ssub.s32 1, %s5
  %s8 = scalar_select 0, %s7, %s5
  $region1: #{tpu_custom_call.1} parent=0
    #allocation2 [shape = 'u8[2048]{0}', space=vmem, size = 0x800, scoped, tag = 'input window, operand 0, single buffered']
    #allocation3 [shape = 's32[1]{0}', space=sflag, size = 0x4, scoped, tag = 'scoped memory for tpu_custom_call.1']
    #allocation4 [shape = 's32[1]{0}', space=sflag, size = 0x4, scoped, tag = 'scoped memory for tpu_custom_call.1']
    #allocation5 [shape = 'u8[65536]{0}', space=vmem, size = 0x10000, scoped, tag = 'input window, operand 1, single buffered']
    #allocation6 [shape = 's32[1]{0}', space=sflag, size = 0x4, scoped, tag = 'scoped memory for tpu_custom_call.1']
    #allocation7 [shape = 'u8[8192]{0}', space=vmem, size = 0x2000, scoped, tag = 'input window, operand 2, single buffered']
    #allocation8 [shape = 'u8[65536]{0}', space=vmem, size = 0x10000, scoped, tag = 'input window, operand 3, single buffered']
    #allocation9 [shape = 's32[1]{0}', space=sflag, size = 0x4, scoped, tag = 'scoped memory for tpu_custom_call.1']
    #allocation10 [shape = 'u8[8192]{0}', space=vmem, size = 0x2000, scoped, tag = 'output window, operand 0, single buffered']
    %9 = vsyncpa [#allocation3], 0
    %10 = vsyncpa [#allocation6], 0
    %11 = vsyncpa [#allocation9], 0
    %12 = vsyncpa [#allocation4], 0
    // Predicated region
    $region2: #{tpu_custom_call.1} parent=1 // pred_check
      _
    $region3: #{tpu_custom_call.1} parent=1 // pred_check_branch
      %14 = sbr.rel (0) target = $region5
    $region4: #{tpu_custom_call.1} parent=1 // pred_region
      %16 = vsyncadd [#allocation3], 0
      %s18 = sshll.u32 %s0, 4
      %s19 = int_to_ptr.hbm [resolvable:$true] %s18
      %s20 = sshll.u32 [#allocation2], 4
      %s21 = int_to_ptr.vmem [resolvable:$true] %s20
      %23 = dma.hbm_to_vmem [thread:$0]  %s19, 64, %s21, [#allocation3]
    $region5: #{tpu_custom_call.1} parent=1 // pred_fallthru
      _
    // Predicated region
    $region6: #{tpu_custom_call.1} parent=1 // pred_check
      _
    $region7: #{tpu_custom_call.1} parent=1 // pred_check_branch
      %25 = sbr.rel (0) target = $region9
    $region8: #{tpu_custom_call.1} parent=1 // pred_region
      %27 = vsyncadd [#allocation6], 0
      %s28 = sshll.u32 %s1, 4
      %s29 = int_to_ptr.hbm [resolvable:$true] %s28
      %s30 = sshll.u32 [#allocation5], 4
      %s31 = int_to_ptr.vmem [resolvable:$true] %s30
      %36 = dma.hbm_to_vmem [thread:$0]  %s29, 2048, %s31, [#allocation6], 128, 128, 8
    $region9: #{tpu_custom_call.1} parent=1 // pred_fallthru
      _
    // Predicated region
    $region10: #{tpu_custom_call.1} parent=1 // pred_check
      _
    $region11: #{tpu_custom_call.1} parent=1 // pred_check_branch
      %38 = sbr.rel (0) target = $region13
    $region12: #{tpu_custom_call.1} parent=1 // pred_region
      %40 = vsyncadd [#allocation6], 0
      %s41 = sshll.u32 %s2, 4
      %s42 = int_to_ptr.hbm [resolvable:$true] %s41
      %s43 = sshll.u32 [#allocation7], 4
      %s44 = int_to_ptr.vmem [resolvable:$true] %s43
      %49 = dma.hbm_to_vmem [thread:$0]  %s42, 256, %s44, [#allocation6], 128, 128, 8
    $region13: #{tpu_custom_call.1} parent=1 // pred_fallthru
      _
    // Predicated region
    $region14: #{tpu_custom_call.1} parent=1 // pred_check
      _
    $region15: #{tpu_custom_call.1} parent=1 // pred_check_branch
      %51 = sbr.rel (0) target = $region17
    $region16: #{tpu_custom_call.1} parent=1 // pred_region
      %53 = vsyncadd [#allocation9], 0
      %s54 = sshll.u32 %s3, 4
      %s55 = int_to_ptr.hbm [resolvable:$true] %s54
      %s56 = sshll.u32 [#allocation8], 4
      %s57 = int_to_ptr.vmem [resolvable:$true] %s56
      %62 = dma.hbm_to_vmem [thread:$0]  %s55, 2048, %s57, [#allocation9], 64, 64, 4
    $region17: #{tpu_custom_call.1} parent=1 // pred_fallthru
      _
    // Predicated region
    $region18: #{tpu_custom_call.1} parent=1 // pred_check
      _
    $region19: #{tpu_custom_call.1} parent=1 // pred_check_branch
      %64 = sbr.rel (0) target = $region21
    $region20: #{tpu_custom_call.1} parent=1 // pred_region
      %66 = dma.done [#allocation3], 64
    $region21: #{tpu_custom_call.1} parent=1 // pred_fallthru
      _
    // Predicated region
    $region22: #{tpu_custom_call.1} parent=1 // pred_check
      _
    $region23: #{tpu_custom_call.1} parent=1 // pred_check_branch
      %68 = sbr.rel (0) target = $region25
    $region24: #{tpu_custom_call.1} parent=1 // pred_region
      %70 = dma.done [#allocation6], 2048
    $region25: #{tpu_custom_call.1} parent=1 // pred_fallthru
      _
    // Predicated region
    $region26: #{tpu_custom_call.1} parent=1 // pred_check
      _
    $region27: #{tpu_custom_call.1} parent=1 // pred_check_branch
      %72 = sbr.rel (0) target = $region29
    $region28: #{tpu_custom_call.1} parent=1 // pred_region
      %74 = dma.done [#allocation6], 256
    $region29: #{tpu_custom_call.1} parent=1 // pred_fallthru
      _
    // Predicated region
    $region30: #{tpu_custom_call.1} parent=1 // pred_check
      _
    $region31: #{tpu_custom_call.1} parent=1 // pred_check_branch
      %76 = sbr.rel (0) target = $region33
    $region32: #{tpu_custom_call.1} parent=1 // pred_region
      %78 = dma.done [#allocation9], 2048
    $region33: #{tpu_custom_call.1} parent=1 // pred_fallthru
      _
    %v79 = vld [vmem:[#allocation2] sm:$0xf]
    %v80 = vld [vmem:[#allocation5] sm:$0xff]
    %v81 = vld [vmem:[#allocation5 + $0x8] sm:$0xff]
    %v82 = vld [vmem:[#allocation5 + $0x10] sm:$0xff]
    %v83 = vld [vmem:[#allocation5 + $0x18] sm:$0xff]
    %v84 = vld [vmem:[#allocation5 + $0x20] sm:$0xff]
    %v85 = vld [vmem:[#allocation5 + $0x28] sm:$0xff]
    %v86 = vld [vmem:[#allocation5 + $0x30] sm:$0xff]
    %v87 = vld [vmem:[#allocation5 + $0x38] sm:$0xff]
    %v88 = vld [vmem:[#allocation5 + $0x40] sm:$0xff]
    %v89 = vld [vmem:[#allocation5 + $0x48] sm:$0xff]
    %v90 = vld [vmem:[#allocation5 + $0x50] sm:$0xff]
    %v91 = vld [vmem:[#allocation5 + $0x58] sm:$0xff]
    %v92 = vld [vmem:[#allocation5 + $0x60] sm:$0xff]
    %v93 = vld [vmem:[#allocation5 + $0x68] sm:$0xff]
    %v94 = vld [vmem:[#allocation5 + $0x70] sm:$0xff]
    %v95 = vld [vmem:[#allocation5 + $0x78] sm:$0xff]
    %v112 = vunpack.c.l.b16 %v80
    %v113 = vunpack.c.h.b16 %v80
    %v114 = vunpack.c.l.b16 %v81
    %v115 = vunpack.c.h.b16 %v81
    %v116 = vunpack.c.l.b16 %v82
    %v117 = vunpack.c.h.b16 %v82
    %v118 = vunpack.c.l.b16 %v83
    %v119 = vunpack.c.h.b16 %v83
    %v120 = vunpack.c.l.b16 %v84
    %v121 = vunpack.c.h.b16 %v84
    %v122 = vunpack.c.l.b16 %v85
    %v123 = vunpack.c.h.b16 %v85
    %v124 = vunpack.c.l.b16 %v86
    %v125 = vunpack.c.h.b16 %v86
    %v126 = vunpack.c.l.b16 %v87
    %v127 = vunpack.c.h.b16 %v87
    %v128 = vunpack.c.l.b16 %v88
    %v129 = vunpack.c.h.b16 %v88
    %v130 = vunpack.c.l.b16 %v89
    %v131 = vunpack.c.h.b16 %v89
    %v132 = vunpack.c.l.b16 %v90
    %v133 = vunpack.c.h.b16 %v90
    %v134 = vunpack.c.l.b16 %v91
    %v135 = vunpack.c.h.b16 %v91
    %v136 = vunpack.c.l.b16 %v92
    %v137 = vunpack.c.h.b16 %v92
    %v138 = vunpack.c.l.b16 %v93
    %v139 = vunpack.c.h.b16 %v93
    %v140 = vunpack.c.l.b16 %v94
    %v141 = vunpack.c.h.b16 %v94
    %v142 = vunpack.c.l.b16 %v95
    %v143 = vunpack.c.h.b16 %v95
    %v144 = vpack.c.b16 %v114, %v112
    %v145 = vpack.c.b16 %v115, %v113
    %v146 = vpack.c.b16 %v118, %v116
    %v147 = vpack.c.b16 %v119, %v117
    %v148 = vpack.c.b16 %v122, %v120
    %v149 = vpack.c.b16 %v123, %v121
    %v150 = vpack.c.b16 %v126, %v124
    %v151 = vpack.c.b16 %v127, %v125
    %v152 = vpack.c.b16 %v130, %v128
    %v153 = vpack.c.b16 %v131, %v129
    %v154 = vpack.c.b16 %v134, %v132
    %v155 = vpack.c.b16 %v135, %v133
    %v156 = vpack.c.b16 %v138, %v136
    %v157 = vpack.c.b16 %v139, %v137
    %v158 = vpack.c.b16 %v142, %v140
    %v159 = vpack.c.b16 %v143, %v141
    %176 = vmatpush.bf16.msra.mxu0 %v158
    %177 = vmatpush.bf16.msra.mxu0 %v156
    %178 = vmatpush.bf16.msra.mxu0 %v154
    %179 = vmatpush.bf16.msra.mxu0 %v152
    %180 = vmatpush.bf16.msra.mxu0 %v150
    %181 = vmatpush.bf16.msra.mxu0 %v148
    %182 = vmatpush.bf16.msra.mxu0 %v146
    %183 = vmatpush.bf16.msra.mxu0 %v144
    %184 = vmatmul.bf16.gmra.mxu0 %v79
    %v185 = vpop.f32.mrf.mxu0
    %v186 = vadd.f32 0.0, %v185
    %v187 = vpop.f32.mrf.mxu0
    %188 = vdwg.mxu0
    %189 = vmatpush.bf16.msra.mxu0 %v159
    %190 = vmatpush.bf16.msra.mxu0 %v157
    %191 = vmatpush.bf16.msra.mxu0 %v155
    %192 = vmatpush.bf16.msra.mxu0 %v153
    %193 = vmatpush.bf16.msra.mxu0 %v151
    %194 = vmatpush.bf16.msra.mxu0 %v149
    %195 = vmatpush.bf16.msra.mxu0 %v147
    %196 = vmatpush.bf16.msra.mxu0 %v145
    %197 = vmatmul.bf16.gmra.mxu0 %v79
    %v198 = vpop.f32.mrf.mxu0
    %v199 = vadd.f32 0.0, %v198
    %v200 = vpop.f32.mrf.mxu0
    %201 = vdwg.mxu0
    %v202 = vpack.c.bf16 %v199, %v186
    %v203 = vld [vmem:[#allocation7] sm:$0xff]
    %v204 = vld [vmem:[#allocation7 + $0x8] sm:$0xff]
    %v205 = vunpack.c.l.bf16 %v202
    %v206 = vunpack.c.h.bf16 %v202
    %v207 = vunpack.c.l.bf16 %v203
    %v208 = vunpack.c.h.bf16 %v203
    %v209 = vunpack.c.l.bf16 %v204
    %v210 = vunpack.c.h.bf16 %v204
    %v211 = vmul.f32 %v205, %v207
    %v212 = vmul.f32 %v206, %v208
    %v213 = vmul.f32 %v205, %v209
    %v214 = vmul.f32 %v206, %v210
    %v215 = vpack.c.bf16 %v212, %v211
    %v216 = vpack.c.bf16 %v214, %v213
    %v217 = vld [vmem:[#allocation8] sm:$0xf]
    %v218 = vld [vmem:[#allocation8 + $0x4] sm:$0xf]
    %v219 = vld [vmem:[#allocation8 + $0x8] sm:$0xf]
    %v220 = vld [vmem:[#allocation8 + $0xc] sm:$0xf]
    %v221 = vld [vmem:[#allocation8 + $0x10] sm:$0xf]
    %v222 = vld [vmem:[#allocation8 + $0x14] sm:$0xf]
    %v223 = vld [vmem:[#allocation8 + $0x18] sm:$0xf]
    %v224 = vld [vmem:[#allocation8 + $0x1c] sm:$0xf]
    %v225 = vld [vmem:[#allocation8 + $0x20] sm:$0xf]
    %v226 = vld [vmem:[#allocation8 + $0x24] sm:$0xf]
    %v227 = vld [vmem:[#allocation8 + $0x28] sm:$0xf]
    %v228 = vld [vmem:[#allocation8 + $0x2c] sm:$0xf]
    %v229 = vld [vmem:[#allocation8 + $0x30] sm:$0xf]
    %v230 = vld [vmem:[#allocation8 + $0x34] sm:$0xf]
    %v231 = vld [vmem:[#allocation8 + $0x38] sm:$0xf]
    %v232 = vld [vmem:[#allocation8 + $0x3c] sm:$0xf]
    %v233 = vld [vmem:[#allocation8 + $0x40] sm:$0xf]
    %v234 = vld [vmem:[#allocation8 + $0x44] sm:$0xf]
    %v235 = vld [vmem:[#allocation8 + $0x48] sm:$0xf]
    %v236 = vld [vmem:[#allocation8 + $0x4c] sm:$0xf]
    %v237 = vld [vmem:[#allocation8 + $0x50] sm:$0xf]
    %v238 = vld [vmem:[#allocation8 + $0x54] sm:$0xf]
    %v239 = vld [vmem:[#allocation8 + $0x58] sm:$0xf]
    %v240 = vld [vmem:[#allocation8 + $0x5c] sm:$0xf]
    %v241 = vld [vmem:[#allocation8 + $0x60] sm:$0xf]
    %v242 = vld [vmem:[#allocation8 + $0x64] sm:$0xf]
    %v243 = vld [vmem:[#allocation8 + $0x68] sm:$0xf]
    %v244 = vld [vmem:[#allocation8 + $0x6c] sm:$0xf]
    %v245 = vld [vmem:[#allocation8 + $0x70] sm:$0xf]
    %v246 = vld [vmem:[#allocation8 + $0x74] sm:$0xf]
    %v247 = vld [vmem:[#allocation8 + $0x78] sm:$0xf]
    %v248 = vld [vmem:[#allocation8 + $0x7c] sm:$0xf]
    %v251 = vunpack.c.l.b16 %v215
    %v252 = vunpack.c.h.b16 %v215
    %v253 = vunpack.c.l.b16 %v216
    %v254 = vunpack.c.h.b16 %v216
    %v255 = vpack.c.b16 %v253, %v251
    %v256 = vpack.c.b16 %v254, %v252
    %v291 = vunpack.c.l.b16 %v217
    %v292 = vunpack.c.l.b16 %v218
    %v293 = vunpack.c.l.b16 %v219
    %v294 = vunpack.c.l.b16 %v220
    %v295 = vunpack.c.l.b16 %v221
    %v296 = vunpack.c.l.b16 %v222
    %v297 = vunpack.c.l.b16 %v223
    %v298 = vunpack.c.l.b16 %v224
    %v299 = vunpack.c.l.b16 %v225
    %v300 = vunpack.c.l.b16 %v226
    %v301 = vunpack.c.l.b16 %v227
    %v302 = vunpack.c.l.b16 %v228
    %v303 = vunpack.c.l.b16 %v229
    %v304 = vunpack.c.l.b16 %v230
    %v305 = vunpack.c.l.b16 %v231
    %v306 = vunpack.c.l.b16 %v232
    %v307 = vunpack.c.l.b16 %v233
    %v308 = vunpack.c.l.b16 %v234
    %v309 = vunpack.c.l.b16 %v235
    %v310 = vunpack.c.l.b16 %v236
    %v311 = vunpack.c.l.b16 %v237
    %v312 = vunpack.c.l.b16 %v238
    %v313 = vunpack.c.l.b16 %v239
    %v314 = vunpack.c.l.b16 %v240
    %v315 = vunpack.c.l.b16 %v241
    %v316 = vunpack.c.l.b16 %v242
    %v317 = vunpack.c.l.b16 %v243
    %v318 = vunpack.c.l.b16 %v244
    %v319 = vunpack.c.l.b16 %v245
    %v320 = vunpack.c.l.b16 %v246
    %v321 = vunpack.c.l.b16 %v247
    %v322 = vunpack.c.l.b16 %v248
    %v323 = vpack.c.b16 %v292, %v291
    %v324 = vpack.c.b16 %v294, %v293
    %v325 = vpack.c.b16 %v296, %v295
    %v326 = vpack.c.b16 %v298, %v297
    %v327 = vpack.c.b16 %v300, %v299
    %v328 = vpack.c.b16 %v302, %v301
    %v329 = vpack.c.b16 %v304, %v303
    %v330 = vpack.c.b16 %v306, %v305
    %v331 = vpack.c.b16 %v308, %v307
    %v332 = vpack.c.b16 %v310, %v309
    %v333 = vpack.c.b16 %v312, %v311
    %v334 = vpack.c.b16 %v314, %v313
    %v335 = vpack.c.b16 %v316, %v315
    %v336 = vpack.c.b16 %v318, %v317
    %v337 = vpack.c.b16 %v320, %v319
    %v338 = vpack.c.b16 %v322, %v321
    %355 = vmatpush.bf16.msra.mxu0 %v330
    %356 = vmatpush.bf16.msra.mxu0 %v329
    %357 = vmatpush.bf16.msra.mxu0 %v328
    %358 = vmatpush.bf16.msra.mxu0 %v327
    %359 = vmatpush.bf16.msra.mxu0 %v326
    %360 = vmatpush.bf16.msra.mxu0 %v325
    %361 = vmatpush.bf16.msra.mxu0 %v324
    %362 = vmatpush.bf16.msra.mxu0 %v323
    %363 = vmatmul.bf16.gmra.mxu0 %v255
    %v364 = vpop.f32.mrf.mxu0
    %v365 = vadd.f32 0.0, %v364
    %v366 = vpop.f32.mrf.mxu0
    %v367 = vadd.f32 0.0, %v366
    %368 = vdwg.mxu0
    %369 = vmatpush.bf16.msra.mxu0 %v338
    %370 = vmatpush.bf16.msra.mxu0 %v337
    %371 = vmatpush.bf16.msra.mxu0 %v336
    %372 = vmatpush.bf16.msra.mxu0 %v335
    %373 = vmatpush.bf16.msra.mxu0 %v334
    %374 = vmatpush.bf16.msra.mxu0 %v333
    %375 = vmatpush.bf16.msra.mxu0 %v332
    %376 = vmatpush.bf16.msra.mxu0 %v331
    %377 = vmatmul.bf16.gmra.mxu0 %v256
    %v378 = vpop.f32.mrf.mxu0
    %v379 = vadd.f32 %v365, %v378
    %v380 = vpop.f32.mrf.mxu0
    %v381 = vadd.f32 %v367, %v380
    %382 = vdwg.mxu0
    %383 = vst [vmem:[#allocation10] sm:$0xff] %v379
    %384 = vst [vmem:[#allocation10 + $0x8] sm:$0xff] %v381
    // Predicated region
    $region34: #{tpu_custom_call.1} parent=1 // pred_check
      _
    $region35: #{tpu_custom_call.1} parent=1 // pred_check_branch
      %386 = sbr.rel (0) target = $region37
    $region36: #{tpu_custom_call.1} parent=1 // pred_region
      %388 = vsyncadd [#allocation4], 0
      %s390 = sshll.u32 [#allocation10], 4
      %s391 = int_to_ptr.vmem [resolvable:$true] %s390
      %s392 = sshll.u32 %s4, 4
      %s393 = int_to_ptr.hbm [resolvable:$true] %s392
      %395 = dma.vmem_to_hbm [thread:$0]  %s391, 256, %s393, [#allocation4]
    $region37: #{tpu_custom_call.1} parent=1 // pred_fallthru
      _
    // Predicated region
    $region38: #{tpu_custom_call.1} parent=1 // pred_check
      _
    $region39: #{tpu_custom_call.1} parent=1 // pred_check_branch
      %397 = sbr.rel (0) target = $region41
    $region40: #{tpu_custom_call.1} parent=1 // pred_region
      %399 = dma.done [#allocation4], 256
    $region41: #{tpu_custom_call.1} parent=1 // pred_fallthru
      _
    %400 = vsyncpa [#allocation3], 1
    %401 = vsyncpa [#allocation6], 1
    %402 = vsyncpa [#allocation9], 1
    %403 = vsyncpa [#allocation4], 1

</llo_original>
